<compile_context>
chip_gen: v5e
topology: v5e:2x2
jax: 0.10.0
libtpu: 0.0.40
codegen_flags: <defaults>
</compile_context>

<pallas_src>
import functools

import jax
import jax.numpy as jnp
from jax import lax
from jax.experimental import pallas as pl
from jax.experimental.pallas import tpu as pltpu


def _stats_kernel(x_ref, t_ref, tp_ref, sp_ref, cnt_ref, nll_ref, foc_ref, *, gamma):
    # x_ref : (1, C, T)  f32 logits for one batch element, one spatial tile
    # t_ref : (1, 1, T)  i32 label map tile
    # out refs (accumulators, resident across the spatial grid axis): (1, 1, C) f32
    k = pl.program_id(1)

    @pl.when(k == 0)
    def _init():
        tp_ref[...] = jnp.zeros_like(tp_ref)
        sp_ref[...] = jnp.zeros_like(sp_ref)
        cnt_ref[...] = jnp.zeros_like(cnt_ref)
        nll_ref[...] = jnp.zeros_like(nll_ref)
        foc_ref[...] = jnp.zeros_like(foc_ref)

    x = x_ref[...]                                   # (1, C, T)
    t = t_ref[...]                                   # (1, 1, T)

    # Shared softmax / log-softmax: C exps + 1 log + 1 divide per pixel (EUP).
    m = jnp.max(x, axis=1, keepdims=True)            # (1, 1, T)
    e = jnp.exp(x - m)                               # (1, C, T)
    z = jnp.sum(e, axis=1, keepdims=True)            # (1, 1, T)
    p = e * (1.0 / z)                                # softmax probs
    logp = (x - m) - jnp.log(z)                      # log-softmax

    onehot = (t == lax.broadcasted_iota(jnp.int32, x.shape, 1)).astype(jnp.float32)

    # -log p masked to the true class; reused by both CE and focal terms.
    nlp = -logp * onehot                              # (1, C, T), nonzero at true class only
    one_minus_p = 1.0 - p
    if gamma == 2.0:
        focal_factor = one_minus_p * one_minus_p
    else:  # generic (trace-time static) gamma
        focal_factor = jnp.power(one_minus_p, jnp.float32(gamma))

    # Per-class partial sums over this spatial tile (lane reductions on the XLU).
    tp_ref[0] = tp_ref[0] + jnp.sum(p * onehot, axis=-1)        # soft true positives
    sp_ref[0] = sp_ref[0] + jnp.sum(p, axis=-1)                 # sum of probs (fp = sp - tp)
    cnt_ref[0] = cnt_ref[0] + jnp.sum(onehot, axis=-1)          # class counts (fn = cnt - tp)
    nll_ref[0] = nll_ref[0] + jnp.sum(nlp, axis=-1)             # CE nll per true class
    foc_ref[0] = foc_ref[0] + jnp.sum(focal_factor * nlp, axis=-1)


def _pick_tile_lanes(spatial, n_classes, requested=None):
    """Largest lane tile (multiple of 128) dividing `spatial` within a VMEM budget."""
    if requested is not None:
        if spatial % requested != 0:
            raise ValueError(f"tile_lanes={requested} must divide spatial={spatial}")
        return requested
    # ~8 MiB for the double-buffered input blocks (C f32 logit rows + 1 i32 label row).
    bytes_per_lane = 2 * (n_classes + 1) * 4
    max_lanes = (8 * 1024 * 1024) // bytes_per_lane
    max_lanes = min(max_lanes, 1 << 16)
    max_lanes = max(128, (max_lanes // 128) * 128)
    if spatial <= max_lanes:
        return spatial                                # full-width block is always legal
    for t in range(max_lanes, 0, -128):
        if spatial % t == 0:
            return t
    return spatial  # fallback: one full-width tile


def weight_dc_ce_focal_loss(net_output, target, w, *, smooth=1.0, gamma=2.0,
                            weight_ce=1.0, weight_dice=1.0, weight_focal=0.5,
                            tile_lanes=None):
    """net_output: (B, C, H, W) logits; target: (B, 1, H, W) int labels; w: (C,) class weights."""
    B, C, H, W = net_output.shape
    S = H * W

    x = net_output.reshape(B, C, S).astype(jnp.float32)
    t = target.reshape(B, 1, S).astype(jnp.int32)     # label map stays int32 (no f32 one-hot DMA)
    w = w.astype(jnp.float32)

    tile = _pick_tile_lanes(S, C, tile_lanes)
    num_tiles = S // tile
    grid = (B, num_tiles)

    x_spec = pl.BlockSpec((1, C, tile), lambda b, k: (b, 0, k))
    t_spec = pl.BlockSpec((1, 1, tile), lambda b, k: (b, 0, k))
    s_spec = pl.BlockSpec((1, 1, C), lambda b, k: (b, 0, 0))      # per-b accumulator block

    stat_shape = jax.ShapeDtypeStruct((B, 1, C), jnp.float32)

    cost = pl.CostEstimate(
        flops=int(14 * B * C * S),
        transcendentals=int(B * S * (C + 2)),
        bytes_accessed=int(x.size * 4 + t.size * 4 + 5 * B * C * 4),
    )

    kernel = functools.partial(_stats_kernel, gamma=float(gamma))
    tp, sp, cnt, nll, foc = pl.pallas_call(
        kernel,
        out_shape=(stat_shape,) * 5,
        grid=grid,
        in_specs=[x_spec, t_spec],
        out_specs=(s_spec,) * 5,
        compiler_params=pltpu.CompilerParams(
            dimension_semantics=("parallel", "arbitrary")),
        cost_estimate=cost,
    )(x, t)

    tp, sp, cnt, nll, foc = (a[:, 0] for a in (tp, sp, cnt, nll, foc))   # (B, C)

    # ---- tiny epilogue on (B, C) statistics (weights applied here, outside the kernel) ----
    fp = sp - tp
    fn = cnt - tp
    dc = (2.0 * tp + smooth) / (2.0 * tp + fp + fn + smooth)
    dc = dc * w[None, :]
    dc_loss = -jnp.mean(jnp.sum(dc, axis=1))                     # do_bg=True, batch_dice=False

    ce_loss = jnp.sum(nll * w[None, :]) / jnp.sum(cnt * w[None, :])   # weighted-'mean' CE
    focal_loss = jnp.sum(foc) / jnp.float32(B * S)

    return weight_ce * ce_loss + weight_dice * dc_loss + weight_focal * focal_loss


def _reference(net_output, target, w, *, smooth=1.0, gamma=2.0,
               weight_ce=1.0, weight_dice=1.0, weight_focal=0.5):
    """Pure-JAX mirror of the PyTorch forward (softmax dice + weighted CE + focal)."""
    B, C = net_output.shape[:2]
    x = net_output.astype(jnp.float32)
    lab = target[:, 0].astype(jnp.int32)                          # (B, H, W)
    probs = jax.nn.softmax(x, axis=1)
    logp = jax.nn.log_softmax(x, axis=1)
    onehot = jax.nn.one_hot(lab, C, axis=1, dtype=jnp.float32)    # (B, C, H, W)

    axes = (2, 3)
    tp = jnp.sum(probs * onehot, axis=axes)
    fp = jnp.sum(probs * (1.0 - onehot), axis=axes)
    fn = jnp.sum((1.0 - probs) * onehot, axis=axes)
    dc = (2.0 * tp + smooth) / (2.0 * tp + fp + fn + smooth) * w[None, :]
    dc_loss = -jnp.mean(jnp.sum(dc, axis=1))

    logpt = jnp.sum(logp * onehot, axis=1)                        # (B, H, W)
    pt = jnp.sum(probs * onehot, axis=1)
    wt = w[lab]
    ce_loss = jnp.sum(wt * (-logpt)) / jnp.sum(wt)
    focal_loss = jnp.mean(-((1.0 - pt) ** gamma) * logpt)

    return weight_ce * ce_loss + weight_dice * dc_loss + weight_focal * focal_loss


if __name__ == "__main__":
    B, C, H, W = 2, 4, 16, 16
    key = jax.random.PRNGKey(0)
    k1, k2 = jax.random.split(key)

    net_output = jax.random.normal(k1, (B, C, H, W), dtype=jnp.float32)       # logits
    target = jax.random.randint(k2, (B, 1, H, W), 0, C, dtype=jnp.int32)      # label map, c=1
    w = jnp.linspace(0.5, 2.0, C).astype(jnp.float32)                         # per-class weights

    ref = _reference(net_output, target, w)

    # tile_lanes=128 -> 2 spatial tiles: exercises the accumulate / pl.when init path.
    loss_tiled = weight_dc_ce_focal_loss(net_output, target, w, tile_lanes=128)
    loss_tiled = jax.block_until_ready(loss_tiled)
    assert jnp.allclose(loss_tiled, ref, rtol=1e-4, atol=1e-5), (loss_tiled, ref)

    # default (budget-driven) tile selection -> single full-width tile here.
    loss_auto = weight_dc_ce_focal_loss(net_output, target, w)
    loss_auto = jax.block_until_ready(loss_auto)
    assert jnp.allclose(loss_auto, ref, rtol=1e-4, atol=1e-5), (loss_auto, ref)

    print("KERNEL_OK")
</pallas_src>

<mosaic_0001>
module attributes {stable_mosaic.version = 11 : i64} {
  func.func @_stats_kernel(%arg0: i32, %arg1: i32, %arg2: memref<1x4x128xf32, #tpu.memory_space<vmem>>, %arg3: memref<1x1x128xi32, #tpu.memory_space<vmem>>, %arg4: memref<1x1x4xf32, #tpu.memory_space<vmem>>, %arg5: memref<1x1x4xf32, #tpu.memory_space<vmem>>, %arg6: memref<1x1x4xf32, #tpu.memory_space<vmem>>, %arg7: memref<1x1x4xf32, #tpu.memory_space<vmem>>, %arg8: memref<1x1x4xf32, #tpu.memory_space<vmem>>) attributes {dimension_semantics = [#tpu.dimension_semantics<parallel>, #tpu.dimension_semantics<arbitrary>], iteration_bounds = array<i64: 2, 2>, scalar_prefetch = 0 : i64, scratch_operands = 0 : i64, tpu.core_type = #tpu.core_type<tc>, window_params = [{transform_indices = @transform_0, window_bounds = array<i64: 1, 4, 128>}, {transform_indices = @transform_1, window_bounds = array<i64: 1, 1, 128>}, {transform_indices = @transform_2, window_bounds = array<i64: 1, 1, 4>}, {transform_indices = @transform_3, window_bounds = array<i64: 1, 1, 4>}, {transform_indices = @transform_4, window_bounds = array<i64: 1, 1, 4>}, {transform_indices = @transform_5, window_bounds = array<i64: 1, 1, 4>}, {transform_indices = @transform_6, window_bounds = array<i64: 1, 1, 4>}]} {
    %c0_i32 = arith.constant 0 : i32
    %0 = arith.cmpi eq, %arg1, %c0_i32 : i32
    %1 = arith.extui %0 : i1 to i32
    %c0_i32_0 = arith.constant 0 : i32
    %2 = arith.cmpi ne, %1, %c0_i32_0 : i32
    scf.if %2 {
      %cst_45 = arith.constant 0.000000e+00 : f32
      %69 = vector.broadcast %cst_45 : f32 to vector<1x1x4xf32>
      %c0_46 = arith.constant 0 : index
      %c0_47 = arith.constant 0 : index
      %c0_48 = arith.constant 0 : index
      %70 = vector.load %arg4[%c0_46, %c0_47, %c0_48] : memref<1x1x4xf32, #tpu.memory_space<vmem>>, vector<1x1x4xf32>
      tpu.vector_store %arg4[%c0_46, %c0_47, %c0_48], %69 {strides = array<i32>} : memref<1x1x4xf32, #tpu.memory_space<vmem>>, vector<1x1x4xf32>,
      %cst_49 = arith.constant 0.000000e+00 : f32
      %71 = vector.broadcast %cst_49 : f32 to vector<1x1x4xf32>
      %c0_50 = arith.constant 0 : index
      %c0_51 = arith.constant 0 : index
      %c0_52 = arith.constant 0 : index
      %72 = vector.load %arg5[%c0_50, %c0_51, %c0_52] : memref<1x1x4xf32, #tpu.memory_space<vmem>>, vector<1x1x4xf32>
      tpu.vector_store %arg5[%c0_50, %c0_51, %c0_52], %71 {strides = array<i32>} : memref<1x1x4xf32, #tpu.memory_space<vmem>>, vector<1x1x4xf32>,
      %cst_53 = arith.constant 0.000000e+00 : f32
      %73 = vector.broadcast %cst_53 : f32 to vector<1x1x4xf32>
      %c0_54 = arith.constant 0 : index
      %c0_55 = arith.constant 0 : index
      %c0_56 = arith.constant 0 : index
      %74 = vector.load %arg6[%c0_54, %c0_55, %c0_56] : memref<1x1x4xf32, #tpu.memory_space<vmem>>, vector<1x1x4xf32>
      tpu.vector_store %arg6[%c0_54, %c0_55, %c0_56], %73 {strides = array<i32>} : memref<1x1x4xf32, #tpu.memory_space<vmem>>, vector<1x1x4xf32>,
      %cst_57 = arith.constant 0.000000e+00 : f32
      %75 = vector.broadcast %cst_57 : f32 to vector<1x1x4xf32>
      %c0_58 = arith.constant 0 : index
      %c0_59 = arith.constant 0 : index
      %c0_60 = arith.constant 0 : index
      %76 = vector.load %arg7[%c0_58, %c0_59, %c0_60] : memref<1x1x4xf32, #tpu.memory_space<vmem>>, vector<1x1x4xf32>
      tpu.vector_store %arg7[%c0_58, %c0_59, %c0_60], %75 {strides = array<i32>} : memref<1x1x4xf32, #tpu.memory_space<vmem>>, vector<1x1x4xf32>,
      %cst_61 = arith.constant 0.000000e+00 : f32
      %77 = vector.broadcast %cst_61 : f32 to vector<1x1x4xf32>
      %c0_62 = arith.constant 0 : index
      %c0_63 = arith.constant 0 : index
      %c0_64 = arith.constant 0 : index
      %78 = vector.load %arg8[%c0_62, %c0_63, %c0_64] : memref<1x1x4xf32, #tpu.memory_space<vmem>>, vector<1x1x4xf32>
      tpu.vector_store %arg8[%c0_62, %c0_63, %c0_64], %77 {strides = array<i32>} : memref<1x1x4xf32, #tpu.memory_space<vmem>>, vector<1x1x4xf32>,
    } else {
    }
    %c0 = arith.constant 0 : index
    %c0_1 = arith.constant 0 : index
    %c0_2 = arith.constant 0 : index
    %3 = vector.load %arg2[%c0, %c0_1, %c0_2] : memref<1x4x128xf32, #tpu.memory_space<vmem>>, vector<1x4x128xf32>
    %c0_3 = arith.constant 0 : index
    %c0_4 = arith.constant 0 : index
    %c0_5 = arith.constant 0 : index
    %4 = vector.load %arg3[%c0_3, %c0_4, %c0_5] : memref<1x1x128xi32, #tpu.memory_space<vmem>>, vector<1x1x128xi32>
    %cst = arith.constant dense<0xFF800000> : vector<1x128xf32>
    %5 = vector.multi_reduction <maximumf>, %3, %cst [1] : vector<1x4x128xf32> to vector<1x128xf32>
    %6 = vector.shape_cast %5 : vector<1x128xf32> to vector<1x1x128xf32>
    %7 = vector.broadcast %6 : vector<1x1x128xf32> to vector<1x4x128xf32>
    %8 = arith.subf %3, %7 : vector<1x4x128xf32>
    %9 = math.exp %8 : vector<1x4x128xf32>
    %cst_6 = arith.constant dense<0.000000e+00> : vector<1x128xf32>
    %10 = vector.multi_reduction <add>, %9, %cst_6 [1] : vector<1x4x128xf32> to vector<1x128xf32>
    %11 = vector.shape_cast %10 : vector<1x128xf32> to vector<1x1x128xf32>
    %cst_7 = arith.constant 1.000000e+00 : f32
    %12 = vector.broadcast %cst_7 : f32 to vector<1x1x128xf32>
    %13 = arith.divf %12, %11 : vector<1x1x128xf32>
    %14 = vector.broadcast %13 : vector<1x1x128xf32> to vector<1x4x128xf32>
    %15 = arith.mulf %9, %14 : vector<1x4x128xf32>
    %16 = vector.broadcast %6 : vector<1x1x128xf32> to vector<1x4x128xf32>
    %17 = arith.subf %3, %16 : vector<1x4x128xf32>
    %18 = math.log %11 : vector<1x1x128xf32>
    %19 = vector.broadcast %18 : vector<1x1x128xf32> to vector<1x4x128xf32>
    %20 = arith.subf %17, %19 : vector<1x4x128xf32>
    %21 = tpu.iota {dimensions = array<i32: 1>} : vector<1x4x128xi32>
    %22 = vector.broadcast %4 : vector<1x1x128xi32> to vector<1x4x128xi32>
    %23 = arith.cmpi eq, %22, %21 : vector<1x4x128xi32>
    %24 = arith.extui %23 : vector<1x4x128xi1> to vector<1x4x128xi32>
    %25 = arith.sitofp %24 : vector<1x4x128xi32> to vector<1x4x128xf32>
    %cst_8 = arith.constant 0.000000e+00 : f32
    %26 = vector.broadcast %cst_8 : f32 to vector<1x4x128xf32>
    %27 = arith.subf %26, %20 : vector<1x4x128xf32>
    %28 = arith.mulf %27, %25 : vector<1x4x128xf32>
    %cst_9 = arith.constant 1.000000e+00 : f32
    %29 = vector.broadcast %cst_9 : f32 to vector<1x4x128xf32>
    %30 = arith.subf %29, %15 : vector<1x4x128xf32>
    %31 = arith.mulf %30, %30 : vector<1x4x128xf32>
    %c0_10 = arith.constant 0 : index
    %c0_11 = arith.constant 0 : index
    %c0_12 = arith.constant 0 : index
    %32 = vector.load %arg4[%c0_10, %c0_11, %c0_12] : memref<1x1x4xf32, #tpu.memory_space<vmem>>, vector<1x1x4xf32>
    %33 = vector.shape_cast %32 : vector<1x1x4xf32> to vector<1x4xf32>
    %34 = arith.mulf %15, %25 : vector<1x4x128xf32>
    %cst_13 = arith.constant dense<0.000000e+00> : vector<1x4xf32>
    %35 = vector.multi_reduction <add>, %34, %cst_13 [2] : vector<1x4x128xf32> to vector<1x4xf32>
    %36 = arith.addf %33, %35 : vector<1x4xf32>
    %c0_14 = arith.constant 0 : index
    %c0_15 = arith.constant 0 : index
    %c0_16 = arith.constant 0 : index
    %37 = vector.load %arg4[%c0_14, %c0_15, %c0_16] : memref<1x1x4xf32, #tpu.memory_space<vmem>>, vector<1x1x4xf32>
    %38 = vector.shape_cast %37 : vector<1x1x4xf32> to vector<1x4xf32>
    %39 = vector.shape_cast %36 : vector<1x4xf32> to vector<1x1x4xf32>
    tpu.vector_store %arg4[%c0_14, %c0_15, %c0_16], %39 {strides = array<i32>} : memref<1x1x4xf32, #tpu.memory_space<vmem>>, vector<1x1x4xf32>,
    %c0_17 = arith.constant 0 : index
    %c0_18 = arith.constant 0 : index
    %c0_19 = arith.constant 0 : index
    %40 = vector.load %arg5[%c0_17, %c0_18, %c0_19] : memref<1x1x4xf32, #tpu.memory_space<vmem>>, vector<1x1x4xf32>
    %41 = vector.shape_cast %40 : vector<1x1x4xf32> to vector<1x4xf32>
    %cst_20 = arith.constant dense<0.000000e+00> : vector<1x4xf32>
    %42 = vector.multi_reduction <add>, %15, %cst_20 [2] : vector<1x4x128xf32> to vector<1x4xf32>
    %43 = arith.addf %41, %42 : vector<1x4xf32>
    %c0_21 = arith.constant 0 : index
    %c0_22 = arith.constant 0 : index
    %c0_23 = arith.constant 0 : index
    %44 = vector.load %arg5[%c0_21, %c0_22, %c0_23] : memref<1x1x4xf32, #tpu.memory_space<vmem>>, vector<1x1x4xf32>
    %45 = vector.shape_cast %44 : vector<1x1x4xf32> to vector<1x4xf32>
    %46 = vector.shape_cast %43 : vector<1x4xf32> to vector<1x1x4xf32>
    tpu.vector_store %arg5[%c0_21, %c0_22, %c0_23], %46 {strides = array<i32>} : memref<1x1x4xf32, #tpu.memory_space<vmem>>, vector<1x1x4xf32>,
    %c0_24 = arith.constant 0 : index
    %c0_25 = arith.constant 0 : index
    %c0_26 = arith.constant 0 : index
    %47 = vector.load %arg6[%c0_24, %c0_25, %c0_26] : memref<1x1x4xf32, #tpu.memory_space<vmem>>, vector<1x1x4xf32>
    %48 = vector.shape_cast %47 : vector<1x1x4xf32> to vector<1x4xf32>
    %cst_27 = arith.constant dense<0.000000e+00> : vector<1x4xf32>
    %49 = vector.multi_reduction <add>, %25, %cst_27 [2] : vector<1x4x128xf32> to vector<1x4xf32>
    %50 = arith.addf %48, %49 : vector<1x4xf32>
    %c0_28 = arith.constant 0 : index
    %c0_29 = arith.constant 0 : index
    %c0_30 = arith.constant 0 : index
    %51 = vector.load %arg6[%c0_28, %c0_29, %c0_30] : memref<1x1x4xf32, #tpu.memory_space<vmem>>, vector<1x1x4xf32>
    %52 = vector.shape_cast %51 : vector<1x1x4xf32> to vector<1x4xf32>
    %53 = vector.shape_cast %50 : vector<1x4xf32> to vector<1x1x4xf32>
    tpu.vector_store %arg6[%c0_28, %c0_29, %c0_30], %53 {strides = array<i32>} : memref<1x1x4xf32, #tpu.memory_space<vmem>>, vector<1x1x4xf32>,
    %c0_31 = arith.constant 0 : index
    %c0_32 = arith.constant 0 : index
    %c0_33 = arith.constant 0 : index
    %54 = vector.load %arg7[%c0_31, %c0_32, %c0_33] : memref<1x1x4xf32, #tpu.memory_space<vmem>>, vector<1x1x4xf32>
    %55 = vector.shape_cast %54 : vector<1x1x4xf32> to vector<1x4xf32>
    %cst_34 = arith.constant dense<0.000000e+00> : vector<1x4xf32>
    %56 = vector.multi_reduction <add>, %28, %cst_34 [2] : vector<1x4x128xf32> to vector<1x4xf32>
    %57 = arith.addf %55, %56 : vector<1x4xf32>
    %c0_35 = arith.constant 0 : index
    %c0_36 = arith.constant 0 : index
    %c0_37 = arith.constant 0 : index
    %58 = vector.load %arg7[%c0_35, %c0_36, %c0_37] : memref<1x1x4xf32, #tpu.memory_space<vmem>>, vector<1x1x4xf32>
    %59 = vector.shape_cast %58 : vector<1x1x4xf32> to vector<1x4xf32>
    %60 = vector.shape_cast %57 : vector<1x4xf32> to vector<1x1x4xf32>
    tpu.vector_store %arg7[%c0_35, %c0_36, %c0_37], %60 {strides = array<i32>} : memref<1x1x4xf32, #tpu.memory_space<vmem>>, vector<1x1x4xf32>,
    %c0_38 = arith.constant 0 : index
    %c0_39 = arith.constant 0 : index
    %c0_40 = arith.constant 0 : index
    %61 = vector.load %arg8[%c0_38, %c0_39, %c0_40] : memref<1x1x4xf32, #tpu.memory_space<vmem>>, vector<1x1x4xf32>
    %62 = vector.shape_cast %61 : vector<1x1x4xf32> to vector<1x4xf32>
    %63 = arith.mulf %31, %28 : vector<1x4x128xf32>
    %cst_41 = arith.constant dense<0.000000e+00> : vector<1x4xf32>
    %64 = vector.multi_reduction <add>, %63, %cst_41 [2] : vector<1x4x128xf32> to vector<1x4xf32>
    %65 = arith.addf %62, %64 : vector<1x4xf32>
    %c0_42 = arith.constant 0 : index
    %c0_43 = arith.constant 0 : index
    %c0_44 = arith.constant 0 : index
    %66 = vector.load %arg8[%c0_42, %c0_43, %c0_44] : memref<1x1x4xf32, #tpu.memory_space<vmem>>, vector<1x1x4xf32>
    %67 = vector.shape_cast %66 : vector<1x1x4xf32> to vector<1x4xf32>
    %68 = vector.shape_cast %65 : vector<1x4xf32> to vector<1x1x4xf32>
    tpu.vector_store %arg8[%c0_42, %c0_43, %c0_44], %68 {strides = array<i32>} : memref<1x1x4xf32, #tpu.memory_space<vmem>>, vector<1x1x4xf32>,
    return
  }
  func.func @transform_0(%arg0: i32, %arg1: i32) -> (i32, i32, i32) {
    %c0_i32 = arith.constant 0 : i32
    %c0_i32_0 = arith.constant 0 : i32
    return %arg0, %c0_i32, %arg1 : i32, i32, i32
  }
  func.func @transform_1(%arg0: i32, %arg1: i32) -> (i32, i32, i32) {
    %c0_i32 = arith.constant 0 : i32
    %c0_i32_0 = arith.constant 0 : i32
    return %arg0, %c0_i32, %arg1 : i32, i32, i32
  }
  func.func @transform_2(%arg0: i32, %arg1: i32) -> (i32, i32, i32) {
    %c0_i32 = arith.constant 0 : i32
    %c0_i32_0 = arith.constant 0 : i32
    %c0_i32_1 = arith.constant 0 : i32
    return %arg0, %c0_i32, %c0_i32_0 : i32, i32, i32
  }
  func.func @transform_3(%arg0: i32, %arg1: i32) -> (i32, i32, i32) {
    %c0_i32 = arith.constant 0 : i32
    %c0_i32_0 = arith.constant 0 : i32
    %c0_i32_1 = arith.constant 0 : i32
    return %arg0, %c0_i32, %c0_i32_0 : i32, i32, i32
  }
  func.func @transform_4(%arg0: i32, %arg1: i32) -> (i32, i32, i32) {
    %c0_i32 = arith.constant 0 : i32
    %c0_i32_0 = arith.constant 0 : i32
    %c0_i32_1 = arith.constant 0 : i32
    return %arg0, %c0_i32, %c0_i32_0 : i32, i32, i32
  }
  func.func @transform_5(%arg0: i32, %arg1: i32) -> (i32, i32, i32) {
    %c0_i32 = arith.constant 0 : i32
    %c0_i32_0 = arith.constant 0 : i32
    %c0_i32_1 = arith.constant 0 : i32
    return %arg0, %c0_i32, %c0_i32_0 : i32, i32, i32
  }
  func.func @transform_6(%arg0: i32, %arg1: i32) -> (i32, i32, i32) {
    %c0_i32 = arith.constant 0 : i32
    %c0_i32_0 = arith.constant 0 : i32
    %c0_i32_1 = arith.constant 0 : i32
    return %arg0, %c0_i32, %c0_i32_0 : i32, i32, i32
  }
}

</mosaic_0001>

<llo_original>
// kernel: tpu_custom_call.1
$region0: #{tpu_custom_call.1}
  #allocation0 [shape = 'u32[]', space=smem, size = 0x4, offset = 0x4, fixed_abs, tag = 'smem constant byte address 0x4 - core index']
  #allocation1 [shape = 'u32[72,128]{1,0:T(1,128)}', space=vmem, size = 0x9000, scoped, tag = 'internal scratch']
  %s0 = inlined_call_operand.hbm [shape: f32[2,4,256], index: 0, kind: input, shape index: {}]
  %s1 = inlined_call_operand.hbm [shape: s32[2,1,256], index: 1, kind: input, shape index: {}]
  %s2 = inlined_call_operand.hbm [shape: f32[2,1,4], index: 2, kind: output, shape index: {0}]
  %s3 = inlined_call_operand.hbm [shape: f32[2,1,4], index: 3, kind: output, shape index: {1}]
  %s4 = inlined_call_operand.hbm [shape: f32[2,1,4], index: 4, kind: output, shape index: {2}]
  %s5 = inlined_call_operand.hbm [shape: f32[2,1,4], index: 5, kind: output, shape index: {3}]
  %s6 = inlined_call_operand.hbm [shape: f32[2,1,4], index: 6, kind: output, shape index: {4}]
  %7 = xla_tuple %s2, %s3, %s4, %s5, %s6
  %s8 = sld [smem:[#allocation0]]
  $region85: #{tpu_custom_call.1} parent=0
    _
  %s10 = ssub.s32 1, %s8
  %s11 = scalar_select 0, %s10, %s8
  $region1: #{tpu_custom_call.1} parent=0
    #allocation2 [shape = 'u8[4096]{0}', space=vmem, size = 0x1000, scoped, tag = 'input window, operand 0']
    #allocation3 [shape = 's32[2]{0}', space=sflag, size = 0x8, scoped, tag = 'scoped memory for tpu_custom_call.1']
    #allocation4 [shape = 's32[2]{0}', space=sflag, size = 0x8, scoped, tag = 'scoped memory for tpu_custom_call.1']
    #allocation5 [shape = 'u8[1024]{0}', space=vmem, size = 0x400, scoped, tag = 'input window, operand 1']
    #allocation6 [shape = 's32[2]{0}', space=sflag, size = 0x8, scoped, tag = 'scoped memory for tpu_custom_call.1']
    #allocation7 [shape = 'u8[1024]{0}', space=vmem, size = 0x400, scoped, tag = 'output window, operand 0']
    #allocation8 [shape = 'u8[1024]{0}', space=vmem, size = 0x400, scoped, tag = 'output window, operand 1']
    #allocation9 [shape = 's32[2]{0}', space=sflag, size = 0x8, scoped, tag = 'scoped memory for tpu_custom_call.1']
    #allocation10 [shape = 'u8[1024]{0}', space=vmem, size = 0x400, scoped, tag = 'output window, operand 2']
    #allocation11 [shape = 'u8[1024]{0}', space=vmem, size = 0x400, scoped, tag = 'output window, operand 3']
    #allocation12 [shape = 's32[2]{0}', space=sflag, size = 0x8, scoped, tag = 'scoped memory for tpu_custom_call.1']
    #allocation13 [shape = 'u8[1024]{0}', space=vmem, size = 0x400, scoped, tag = 'output window, operand 4']
    %12 = vsyncpa [#allocation3], 0
    %s13 = scalar_lea.sflag [#allocation3], 1
    %14 = vsyncpa %s13, 0
    %15 = vsyncpa [#allocation6], 0
    %s16 = scalar_lea.sflag [#allocation6], 1
    %17 = vsyncpa %s16, 0
    %18 = vsyncpa [#allocation4], 0
    %s19 = scalar_lea.sflag [#allocation4], 1
    %20 = vsyncpa %s19, 0
    %21 = vsyncpa [#allocation9], 0
    %s22 = scalar_lea.sflag [#allocation9], 1
    %23 = vsyncpa %s22, 0
    %24 = vsyncpa [#allocation12], 0
    %s25 = scalar_lea.sflag [#allocation12], 1
    %26 = vsyncpa %s25, 0
    loop: start=0, step=1, limit=6
    $region2: #{tpu_custom_call.1} parent=1 // loop_pre_header
      _
    $region3: #{tpu_custom_call.1} parent=1 // loop_header
      %s28 = sphi 0, %s32
      %p29 = scmp.ge.s32.totalorder %s28, 6
      %s35 = sphi 0, %s47
      %s36 = sphi 0, %s43
      %s37 = sphi 0, %s35
      %s38 = sphi 0, %s36
      %s39 = sphi 0, %s37
      %s40 = sphi 0, %s38
      %s52 = sphi 0, %s54
      %s55 = sphi 0, %s52
      %s56 = sphi 0, %s55
      %s72 = sphi 0, %s56
      %s80 = sphi 0, %s82
      %s83 = sphi 0, %s80
      %s84 = sphi 0, %s83
      %s100 = sphi 0, %s84
      %s106 = sphi 0, %s108
      %s109 = sphi 0, %s106
      %s110 = sphi 0, %s109
      %s126 = sphi 0, %s110
      %s132 = sphi 0, %s134
      %s135 = sphi 0, %s132
      %s136 = sphi 0, %s135
      %s152 = sphi 0, %s136
      %s158 = sphi 0, %s160
      %s161 = sphi 0, %s158
      %s162 = sphi 0, %s161
      %s178 = sphi 0, %s162
      %s184 = sphi 0, %s186
      %s187 = sphi 0, %s184
      %s188 = sphi 0, %s187
      %s204 = sphi 0, %s188
      %s210 = sphi 0, %s212
      %s213 = sphi 0, %s210
      %s214 = sphi 0, %s213
      %s230 = sphi 0, %s214
    $region4: #{tpu_custom_call.1} parent=1 // loop_header_branch
      %31 = sbr.rel (%p29) target = $region8
    $region5: #{tpu_custom_call.1} parent=1 // loop_body
      %s33 = ssub.s32 %s28, 1
      %s34 = ssub.s32 %s28, 2
      %s41 = sadd.s32 1, %s36
      %p42 = scmp.ge.s32.totalorder %s41, 2
      %s43 = scalar_select %p42, 0, %s41
      %s44 = sadd.s32 1, %s35
      %s45 = scalar_select %p42, %s44, %s35
      %p46 = scmp.ge.s32.totalorder %s45, 2
      %s47 = scalar_select %p46, 0, %s45
      %s48 = ssub.s32 %s35, %s47
      %s49 = ssub.s32 %s36, %s43
      %s50 = sor.u32 %s48, %s49
      %p51 = scmp.eq.s32.totalorder %s50, 0
      %s53 = sadd.s32 %s52, 1
      %s54 = scalar_select %p51, %s52, %s53
      %p57 = pneg %p51
      %p58 = scmp.eq.s32.totalorder %s28, 3
      %p59 = por %p57, %p58
      %p60 = scmp.ne.s32.totalorder %s52, %s55
      %p61 = scmp.eq.s32.totalorder %s28, 0
      %p62 = por %p60, %p61
      %p63 = scmp.ne.s32.totalorder %s52, %s55
      %p64 = scmp.eq.s32.totalorder %s33, 3
      %p65 = por %p63, %p64
      %p66 = scmp.ne.s32.totalorder %s55, %s56
      %p67 = scmp.eq.s32.totalorder %s33, 0
      %p68 = por %p66, %p67
      %p69 = scmp.ne.s32.totalorder %s55, %s56
      %p70 = scmp.eq.s32.totalorder %s34, 3
      %p71 = por %p69, %p70
      %p73 = scmp.ne.s32.totalorder %s56, %s72
      %p74 = scmp.eq.s32.totalorder %s34, 0
      %p75 = por %p73, %p74
      %s76 = ssub.s32 %s35, %s47
      %s77 = ssub.s32 %s36, %s43
      %s78 = sor.u32 %s76, %s77
      %p79 = scmp.eq.s32.totalorder %s78, 0
      %s81 = sadd.s32 %s80, 1
      %s82 = scalar_select %p79, %s80, %s81
      %p85 = pneg %p79
      %p86 = scmp.eq.s32.totalorder %s28, 3
      %p87 = por %p85, %p86
      %p88 = scmp.ne.s32.totalorder %s80, %s83
      %p89 = scmp.eq.s32.totalorder %s28, 0
      %p90 = por %p88, %p89
      %p91 = scmp.ne.s32.totalorder %s80, %s83
      %p92 = scmp.eq.s32.totalorder %s33, 3
      %p93 = por %p91, %p92
      %p94 = scmp.ne.s32.totalorder %s83, %s84
      %p95 = scmp.eq.s32.totalorder %s33, 0
      %p96 = por %p94, %p95
      %p97 = scmp.ne.s32.totalorder %s83, %s84
      %p98 = scmp.eq.s32.totalorder %s34, 3
      %p99 = por %p97, %p98
      %p101 = scmp.ne.s32.totalorder %s84, %s100
      %p102 = scmp.eq.s32.totalorder %s34, 0
      %p103 = por %p101, %p102
      %s104 = ssub.s32 %s35, %s47
      %p105 = scmp.eq.s32.totalorder %s104, 0
      %s107 = sadd.s32 %s106, 1
      %s108 = scalar_select %p105, %s106, %s107
      %p111 = pneg %p105
      %p112 = scmp.eq.s32.totalorder %s28, 3
      %p113 = por %p111, %p112
      %p114 = scmp.ne.s32.totalorder %s106, %s109
      %p115 = scmp.eq.s32.totalorder %s28, 0
      %p116 = por %p114, %p115
      %p117 = scmp.ne.s32.totalorder %s106, %s109
      %p118 = scmp.eq.s32.totalorder %s33, 3
      %p119 = por %p117, %p118
      %p120 = scmp.ne.s32.totalorder %s109, %s110
      %p121 = scmp.eq.s32.totalorder %s33, 0
      %p122 = por %p120, %p121
      %p123 = scmp.ne.s32.totalorder %s109, %s110
      %p124 = scmp.eq.s32.totalorder %s34, 3
      %p125 = por %p123, %p124
      %p127 = scmp.ne.s32.totalorder %s110, %s126
      %p128 = scmp.eq.s32.totalorder %s34, 0
      %p129 = por %p127, %p128
      %s130 = ssub.s32 %s35, %s47
      %p131 = scmp.eq.s32.totalorder %s130, 0
      %s133 = sadd.s32 %s132, 1
      %s134 = scalar_select %p131, %s132, %s133
      %p137 = pneg %p131
      %p138 = scmp.eq.s32.totalorder %s28, 3
      %p139 = por %p137, %p138
      %p140 = scmp.ne.s32.totalorder %s132, %s135
      %p141 = scmp.eq.s32.totalorder %s28, 0
      %p142 = por %p140, %p141
      %p143 = scmp.ne.s32.totalorder %s132, %s135
      %p144 = scmp.eq.s32.totalorder %s33, 3
      %p145 = por %p143, %p144
      %p146 = scmp.ne.s32.totalorder %s135, %s136
      %p147 = scmp.eq.s32.totalorder %s33, 0
      %p148 = por %p146, %p147
      %p149 = scmp.ne.s32.totalorder %s135, %s136
      %p150 = scmp.eq.s32.totalorder %s34, 3
      %p151 = por %p149, %p150
      %p153 = scmp.ne.s32.totalorder %s136, %s152
      %p154 = scmp.eq.s32.totalorder %s34, 0
      %p155 = por %p153, %p154
      %s156 = ssub.s32 %s35, %s47
      %p157 = scmp.eq.s32.totalorder %s156, 0
      %s159 = sadd.s32 %s158, 1
      %s160 = scalar_select %p157, %s158, %s159
      %p163 = pneg %p157
      %p164 = scmp.eq.s32.totalorder %s28, 3
      %p165 = por %p163, %p164
      %p166 = scmp.ne.s32.totalorder %s158, %s161
      %p167 = scmp.eq.s32.totalorder %s28, 0
      %p168 = por %p166, %p167
      %p169 = scmp.ne.s32.totalorder %s158, %s161
      %p170 = scmp.eq.s32.totalorder %s33, 3
      %p171 = por %p169, %p170
      %p172 = scmp.ne.s32.totalorder %s161, %s162
      %p173 = scmp.eq.s32.totalorder %s33, 0
      %p174 = por %p172, %p173
      %p175 = scmp.ne.s32.totalorder %s161, %s162
      %p176 = scmp.eq.s32.totalorder %s34, 3
      %p177 = por %p175, %p176
      %p179 = scmp.ne.s32.totalorder %s162, %s178
      %p180 = scmp.eq.s32.totalorder %s34, 0
      %p181 = por %p179, %p180
      %s182 = ssub.s32 %s35, %s47
      %p183 = scmp.eq.s32.totalorder %s182, 0
      %s185 = sadd.s32 %s184, 1
      %s186 = scalar_select %p183, %s184, %s185
      %p189 = pneg %p183
      %p190 = scmp.eq.s32.totalorder %s28, 3
      %p191 = por %p189, %p190
      %p192 = scmp.ne.s32.totalorder %s184, %s187
      %p193 = scmp.eq.s32.totalorder %s28, 0
      %p194 = por %p192, %p193
      %p195 = scmp.ne.s32.totalorder %s184, %s187
      %p196 = scmp.eq.s32.totalorder %s33, 3
      %p197 = por %p195, %p196
      %p198 = scmp.ne.s32.totalorder %s187, %s188
      %p199 = scmp.eq.s32.totalorder %s33, 0
      %p200 = por %p198, %p199
      %p201 = scmp.ne.s32.totalorder %s187, %s188
      %p202 = scmp.eq.s32.totalorder %s34, 3
      %p203 = por %p201, %p202
      %p205 = scmp.ne.s32.totalorder %s188, %s204
      %p206 = scmp.eq.s32.totalorder %s34, 0
      %p207 = por %p205, %p206
      %s208 = ssub.s32 %s35, %s47
      %p209 = scmp.eq.s32.totalorder %s208, 0
      %s211 = sadd.s32 %s210, 1
      %s212 = scalar_select %p209, %s210, %s211
      %p215 = pneg %p209
      %p216 = scmp.eq.s32.totalorder %s28, 3
      %p217 = por %p215, %p216
      %p218 = scmp.ne.s32.totalorder %s210, %s213
      %p219 = scmp.eq.s32.totalorder %s28, 0
      %p220 = por %p218, %p219
      %p221 = scmp.ne.s32.totalorder %s210, %s213
      %p222 = scmp.eq.s32.totalorder %s33, 3
      %p223 = por %p221, %p222
      %p224 = scmp.ne.s32.totalorder %s213, %s214
      %p225 = scmp.eq.s32.totalorder %s33, 0
      %p226 = por %p224, %p225
      %p227 = scmp.ne.s32.totalorder %s213, %s214
      %p228 = scmp.eq.s32.totalorder %s34, 3
      %p229 = por %p227, %p228
      %p231 = scmp.ne.s32.totalorder %s214, %s230
      %p232 = scmp.eq.s32.totalorder %s34, 0
      %p233 = por %p231, %p232
      %p234 = scmp.le.s32.totalorder 1, %s28
      %p235 = scmp.lt.s32.totalorder %s28, 5
      %p236 = pnand %p234, %p235
      %p237 = pneg %p236
      // Predicated region
      $region9: #{tpu_custom_call.1} parent=5 // pred_check
        _
      $region10: #{tpu_custom_call.1} parent=5 // pred_check_branch
        %239 = sbr.rel (%p236) target = $region12
      $region11: #{tpu_custom_call.1} parent=5 // pred_region
        %s240 = ssub.s32 %s28, 1
      $region12: #{tpu_custom_call.1} parent=5 // pred_fallthru
        _
      %p241 = scmp.lt.s32.totalorder %s28, 4
      // Predicated region
      $region13: #{tpu_custom_call.1} parent=5 // pred_check
        %p242 = pneg %p241
      $region14: #{tpu_custom_call.1} parent=5 // pred_check_branch
        %244 = sbr.rel (%p242) target = $region16
      $region15: #{tpu_custom_call.1} parent=5 // pred_region
        // Predicated region
        $region17: #{tpu_custom_call.1} parent=15 // pred_check
          %p245 = pneg %p62
        $region18: #{tpu_custom_call.1} parent=15 // pred_check_branch
          %247 = sbr.rel (%p245) target = $region20
        $region19: #{tpu_custom_call.1} parent=15 // pred_region
          %s248 = sand.u32 %s52, 1
          %s249 = scalar_lea.sflag [#allocation3], %s248
          %s250 = sand.u32 %s52, 1
          %s251 = smul.addr %s250, 4
          %s252 = scalar_lea.vmem [#allocation2], %s251
          %254 = vsyncadd %s249, 0
          %s255 = smul.addr %s35, 2
          %s256 = sadd.s32 %s36, %s255
          %s257 = smul.addr %s256, 4
          %s258 = scalar_lea.hbm %s0, %s257
          %s260 = sshll.u32 %s258, 4
          %s261 = int_to_ptr.hbm [resolvable:$true] %s260
          %s262 = sshll.u32 %s252, 4
          %s263 = int_to_ptr.vmem [resolvable:$true] %s262
          %265 = dma.hbm_to_vmem [thread:$0]  %s261, 64, %s263, %s249
        $region20: #{tpu_custom_call.1} parent=15 // pred_fallthru
          _
        // Predicated region
        $region21: #{tpu_custom_call.1} parent=15 // pred_check
          %p266 = pneg %p90
        $region22: #{tpu_custom_call.1} parent=15 // pred_check_branch
          %268 = sbr.rel (%p266) target = $region24
        $region23: #{tpu_custom_call.1} parent=15 // pred_region
          %s269 = sand.u32 %s80, 1
          %s270 = scalar_lea.sflag [#allocation6], %s269
          %s271 = sand.u32 %s80, 1
          %s272 = scalar_lea.vmem [#allocation5], %s271
          %274 = vsyncadd %s270, 0
          %s275 = smul.addr %s35, 2
          %s276 = sadd.s32 %s36, %s275
          %s277 = scalar_lea.hbm %s1, %s276
          %s279 = sshll.u32 %s277, 4
          %s280 = int_to_ptr.hbm [resolvable:$true] %s279
          %s281 = sshll.u32 %s272, 4
          %s282 = int_to_ptr.vmem [resolvable:$true] %s281
          %284 = dma.hbm_to_vmem [thread:$0]  %s280, 16, %s282, %s270
        $region24: #{tpu_custom_call.1} parent=15 // pred_fallthru
          _
      $region16: #{tpu_custom_call.1} parent=5 // pred_fallthru
        _
      %p285 = scmp.le.s32.totalorder 1, %s28
      %p286 = scmp.lt.s32.totalorder %s28, 5
      %p287 = pnand %p285, %p286
      %p288 = pneg %p287
      // Predicated region
      $region25: #{tpu_custom_call.1} parent=5 // pred_check
        _
      $region26: #{tpu_custom_call.1} parent=5 // pred_check_branch
        %290 = sbr.rel (%p287) target = $region28
      $region27: #{tpu_custom_call.1} parent=5 // pred_region
        %s291 = ssub.s32 %s28, 1
        %s292 = sand.u32 %s55, 1
        %s293 = scalar_lea.sflag [#allocation3], %s292
        %s294 = sand.u32 %s55, 1
        %s295 = smul.addr %s294, 4
        %s296 = scalar_lea.vmem [#allocation2], %s295
        // Predicated region
        $region29: #{tpu_custom_call.1} parent=27 // pred_check
          %p297 = pneg %p68
        $region30: #{tpu_custom_call.1} parent=27 // pred_check_branch
          %299 = sbr.rel (%p297) target = $region32
        $region31: #{tpu_custom_call.1} parent=27 // pred_region
          %301 = dma.done %s293, 64
        $region32: #{tpu_custom_call.1} parent=27 // pred_fallthru
          _
        %s302 = sand.u32 %s83, 1
        %s303 = scalar_lea.sflag [#allocation6], %s302
        %s304 = sand.u32 %s83, 1
        %s305 = scalar_lea.vmem [#allocation5], %s304
        // Predicated region
        $region33: #{tpu_custom_call.1} parent=27 // pred_check
          %p306 = pneg %p96
        $region34: #{tpu_custom_call.1} parent=27 // pred_check_branch
          %308 = sbr.rel (%p306) target = $region36
        $region35: #{tpu_custom_call.1} parent=27 // pred_region
          %310 = dma.done %s303, 16
        $region36: #{tpu_custom_call.1} parent=27 // pred_fallthru
          _
        %s311 = sand.u32 %s55, 1
        %s312 = scalar_lea.sflag [#allocation3], %s311
        %s313 = sand.u32 %s55, 1
        %s314 = smul.addr %s313, 4
        %s315 = scalar_lea.vmem [#allocation2], %s314
        %p316 = pneg %p68
        %p317 = pneg %p65
        %s318 = sand.u32 %s83, 1
        %s319 = scalar_lea.sflag [#allocation6], %s318
        %s320 = sand.u32 %s83, 1
        %s321 = scalar_lea.vmem [#allocation5], %s320
        %p322 = pneg %p96
        %p323 = pneg %p93
        %p324 = pneg %p122
        %p325 = pneg %p119
        %s326 = sand.u32 %s109, 1
        %s327 = scalar_lea.sflag [#allocation4], %s326
        %s328 = sand.u32 %s109, 1
        %s329 = scalar_lea.vmem [#allocation7], %s328
        %p330 = pneg %p148
        %p331 = pneg %p145
        %s332 = sand.u32 %s33, 1
        %s333 = scalar_lea.sflag [#allocation9], %s332
        %s334 = sand.u32 %s135, 1
        %s335 = scalar_lea.vmem [#allocation8], %s334
        %p336 = pneg %p174
        %p337 = pneg %p171
        %s338 = sand.u32 %s33, 1
        %s339 = scalar_lea.sflag [#allocation9], %s338
        %s340 = sand.u32 %s161, 1
        %s341 = scalar_lea.vmem [#allocation10], %s340
        %p342 = pneg %p200
        %p343 = pneg %p197
        %s344 = sand.u32 %s33, 1
        %s345 = scalar_lea.sflag [#allocation12], %s344
        %s346 = sand.u32 %s187, 1
        %s347 = scalar_lea.vmem [#allocation11], %s346
        %p348 = pneg %p226
        %p349 = pneg %p223
        %s350 = sand.u32 %s33, 1
        %s351 = scalar_lea.sflag [#allocation12], %s350
        %s352 = sand.u32 %s213, 1
        %s353 = scalar_lea.vmem [#allocation13], %s352
        %p354 = scmp.eq.s32.totalorder %s38, 0
        // Predicated region
        $region37: #{tpu_custom_call.1} parent=27 // pred_check
          %p355 = pneg %p354
        $region38: #{tpu_custom_call.1} parent=27 // pred_check_branch
          %357 = sbr.rel (%p355) target = $region40
        $region39: #{tpu_custom_call.1} parent=27 // pred_region
          %vm358 = vcmask 24576
          %359 = vst.msk [vmem:[%s329] sm:$0x1] %vm358, 0.0
          %360 = vst.msk [vmem:[%s335] sm:$0x1] %vm358, 0.0
          %361 = vst.msk [vmem:[%s341] sm:$0x1] %vm358, 0.0
          %362 = vst.msk [vmem:[%s347] sm:$0x1] %vm358, 0.0
          %363 = vst.msk [vmem:[%s353] sm:$0x1] %vm358, 0.0
        $region40: #{tpu_custom_call.1} parent=27 // pred_fallthru
          _
        %v364 = vld [vmem:[%s296] sm:$0xf]
        %v365 = vld [vmem:[%s305] sm:$0x1]
        %vm366 = vcmask 1043456
        %v367 = vsel %vm366, %v364, -inf
        %v368 = vrot.slane %v367, 4
        %v369 = vmax.f32 %v367, %v368
        %v370 = vrot.slane %v369, 2
        %v371 = vmax.f32 %v369, %v370
        %v372 = vrot.slane %v371, 1
        %v373 = vmax.f32 %v371, %v372
        %v374 = vsub.f32 %v364, %v373
        %v375 = vmul.f32 %v374, 1.442695
        %v376 = vpow.pop %v375
        %v377 = vsel %vm366, %v376, 0.0
        %v378 = vrot.slane %v377, 4
        %v379 = vadd.f32 %v377, %v378
        %v380 = vrot.slane %v379, 2
        %v381 = vadd.f32 %v379, %v380
        %v382 = vrot.slane %v381, 1
        %v383 = vadd.f32 %v381, %v382
        %v384 = vrcp.pop %v383
        %v385 = vmul.f32 %v383, %v384
        %v386 = vsub.f32 1.0, %v385
        %v387 = vmul.f32 %v384, %v386
        %v388 = vadd.f32 %v384, %v387
        %vm389 = vweird.f32 %v383
        %vm390 = vweird.f32 %v384
        %vm391 = vmor %vm389, %vm390
        %v392 = vsel %vm391, %v384, %v388
        %v393 = vand.u32 2147483647, %v383
        %vm394 = vcmp.eq.f32.partialorder %v393, 8.507059e+37
        %v395 = vand.u32 %v383, 2147483648
        %v396 = vor.u32 1.1754944e-38, %v395
        %v397 = vsel %vm394, %v396, %v392
        %v398 = vmul.f32 1.0, %v397
        %v399 = vmul.f32 %v376, %v398
        %v400 = vlog2.pop %v383
        %v401 = vmul.f32 %v400, 0.6931472
        %v402 = vsub.f32 %v374, %v401
        %v403 = vlaneseq
        %v404 = vshrl.u32 %v403, 7
        %v405 = vperm.slane %v365, 0
        %vm406 = vcmp.eq.s32.totalorder %v405, %v404
        %v407 = vsel %vm406, 1, 0
        %v408 = vcvt.s32.f32 %v407
        %v409 = vsub.f32 0.0, %v402
        %v410 = vmul.f32 %v409, %v408
        %v411 = vsub.f32 1.0, %v399
        %v412 = vmul.f32 %v411, %v411
        %v413 = vld [vmem:[%s329] sm:$0x1]
        %v414 = vmul.f32 %v399, %v408
        %v415 = vsel %vm366, %v414, 0.0
        %416 = vadd.xlane.f32.xlu0 %v415
        %v417 = vpop.xlane.xlu0 %416
        %v419 = vperm.slane %v417, 0
        %v420 = vperm.slane %v417, 1
        %v421 = vperm.slane %v417, 2
        %v422 = vperm.slane %v417, 3
        %423 = vst [vmem:[#allocation1] ss:$9 sm:$0xff] %v419
        %s424 = scalar_lea.vmem [#allocation1], 1
        %425 = vst [vmem:[%s424] ss:$9 sm:$0xff] %v420
        %s426 = scalar_lea.vmem [#allocation1], 2
        %427 = vst [vmem:[%s426] ss:$9 sm:$0xff] %v421
        %s428 = scalar_lea.vmem [#allocation1], 3
        %429 = vst [vmem:[%s428] ss:$9 sm:$0xff] %v422
        %v430 = vld [vmem:[#allocation1] sm:$0xff]
        %431 = vset.pattern.permute.xlu0 0
        %432 = vperm.xlu0 %431, %v430
        %v433 = vpop.permute.xlu0 %432
        %v434 = vlaneseq
        %v435 = vand.u32 %v434, 127
        %v436 = vperm.slane %v433, %v435
        %v438 = vadd.f32 %v413, %v436
        %vm439 = vcmask 24576
        %440 = vst.msk [vmem:[%s329] sm:$0x1] %vm439, %v438
        %v441 = vld [vmem:[%s335] sm:$0x1]
        %v442 = vsel %vm366, %v399, 0.0
        %443 = vadd.xlane.f32.xlu0 %v442
        %v444 = vpop.xlane.xlu0 %443
        %v446 = vperm.slane %v444, 0
        %v447 = vperm.slane %v444, 1
        %v448 = vperm.slane %v444, 2
        %v449 = vperm.slane %v444, 3
        %450 = vst [vmem:[#allocation1] ss:$9 sm:$0xff] %v446
        %s451 = scalar_lea.vmem [#allocation1], 1
        %452 = vst [vmem:[%s451] ss:$9 sm:$0xff] %v447
        %s453 = scalar_lea.vmem [#allocation1], 2
        %454 = vst [vmem:[%s453] ss:$9 sm:$0xff] %v448
        %s455 = scalar_lea.vmem [#allocation1], 3
        %456 = vst [vmem:[%s455] ss:$9 sm:$0xff] %v449
        %v457 = vld [vmem:[#allocation1] sm:$0xff]
        %458 = vset.pattern.permute.xlu0 0
        %459 = vperm.xlu0 %458, %v457
        %v460 = vpop.permute.xlu0 %459
        %v461 = vperm.slane %v460, %v435
        %v463 = vadd.f32 %v441, %v461
        %464 = vst.msk [vmem:[%s335] sm:$0x1] %vm439, %v463
        %v465 = vld [vmem:[%s341] sm:$0x1]
        %v466 = vsel %vm366, %v408, 0.0
        %467 = vadd.xlane.f32.xlu0 %v466
        %v468 = vpop.xlane.xlu0 %467
        %v470 = vperm.slane %v468, 0
        %v471 = vperm.slane %v468, 1
        %v472 = vperm.slane %v468, 2
        %v473 = vperm.slane %v468, 3
        %474 = vst [vmem:[#allocation1] ss:$9 sm:$0xff] %v470
        %s475 = scalar_lea.vmem [#allocation1], 1
        %476 = vst [vmem:[%s475] ss:$9 sm:$0xff] %v471
        %s477 = scalar_lea.vmem [#allocation1], 2
        %478 = vst [vmem:[%s477] ss:$9 sm:$0xff] %v472
        %s479 = scalar_lea.vmem [#allocation1], 3
        %480 = vst [vmem:[%s479] ss:$9 sm:$0xff] %v473
        %v481 = vld [vmem:[#allocation1] sm:$0xff]
        %482 = vset.pattern.permute.xlu0 0
        %483 = vperm.xlu0 %482, %v481
        %v484 = vpop.permute.xlu0 %483
        %v485 = vperm.slane %v484, %v435
        %v487 = vadd.f32 %v465, %v485
        %488 = vst.msk [vmem:[%s341] sm:$0x1] %vm439, %v487
        %v489 = vld [vmem:[%s347] sm:$0x1]
        %v490 = vsel %vm366, %v410, 0.0
        %491 = vadd.xlane.f32.xlu0 %v490
        %v492 = vpop.xlane.xlu0 %491
        %v494 = vperm.slane %v492, 0
        %v495 = vperm.slane %v492, 1
        %v496 = vperm.slane %v492, 2
        %v497 = vperm.slane %v492, 3
        %498 = vst [vmem:[#allocation1] ss:$9 sm:$0xff] %v494
        %s499 = scalar_lea.vmem [#allocation1], 1
        %500 = vst [vmem:[%s499] ss:$9 sm:$0xff] %v495
        %s501 = scalar_lea.vmem [#allocation1], 2
        %502 = vst [vmem:[%s501] ss:$9 sm:$0xff] %v496
        %s503 = scalar_lea.vmem [#allocation1], 3
        %504 = vst [vmem:[%s503] ss:$9 sm:$0xff] %v497
        %v505 = vld [vmem:[#allocation1] sm:$0xff]
        %506 = vset.pattern.permute.xlu0 0
        %507 = vperm.xlu0 %506, %v505
        %v508 = vpop.permute.xlu0 %507
        %v509 = vperm.slane %v508, %v435
        %v511 = vadd.f32 %v489, %v509
        %512 = vst.msk [vmem:[%s347] sm:$0x1] %vm439, %v511
        %v513 = vld [vmem:[%s353] sm:$0x1]
        %v514 = vmul.f32 %v412, %v410
        %v515 = vsel %vm366, %v514, 0.0
        %516 = vadd.xlane.f32.xlu0 %v515
        %v517 = vpop.xlane.xlu0 %516
        %v519 = vperm.slane %v517, 0
        %v520 = vperm.slane %v517, 1
        %v521 = vperm.slane %v517, 2
        %v522 = vperm.slane %v517, 3
        %523 = vst [vmem:[#allocation1] ss:$9 sm:$0xff] %v519
        %s524 = scalar_lea.vmem [#allocation1], 1
        %525 = vst [vmem:[%s524] ss:$9 sm:$0xff] %v520
        %s526 = scalar_lea.vmem [#allocation1], 2
        %527 = vst [vmem:[%s526] ss:$9 sm:$0xff] %v521
        %s528 = scalar_lea.vmem [#allocation1], 3
        %529 = vst [vmem:[%s528] ss:$9 sm:$0xff] %v522
        %v530 = vld [vmem:[#allocation1] sm:$0xff]
        %531 = vset.pattern.permute.xlu0 0
        %532 = vperm.xlu0 %531, %v530
        %v533 = vpop.permute.xlu0 %532
        %v534 = vperm.slane %v533, %v435
        %v536 = vadd.f32 %v513, %v534
        %537 = vst.msk [vmem:[%s353] sm:$0x1] %vm439, %v536
        %s538 = sand.u32 %s109, 1
        %s539 = scalar_lea.sflag [#allocation4], %s538
        %s540 = sand.u32 %s109, 1
        %s541 = scalar_lea.vmem [#allocation7], %s540
        %s542 = sand.u32 %s33, 1
        %s543 = scalar_lea.sflag [#allocation9], %s542
        %s544 = sand.u32 %s135, 1
        %s545 = scalar_lea.vmem [#allocation8], %s544
        %s546 = sand.u32 %s33, 1
        %s547 = scalar_lea.sflag [#allocation9], %s546
        %s548 = sand.u32 %s161, 1
        %s549 = scalar_lea.vmem [#allocation10], %s548
        %s550 = sand.u32 %s33, 1
        %s551 = scalar_lea.sflag [#allocation12], %s550
        %s552 = sand.u32 %s187, 1
        %s553 = scalar_lea.vmem [#allocation11], %s552
        %s554 = sand.u32 %s33, 1
        %s555 = scalar_lea.sflag [#allocation12], %s554
        %s556 = sand.u32 %s213, 1
        %s557 = scalar_lea.vmem [#allocation13], %s556
        // Predicated region
        $region41: #{tpu_custom_call.1} parent=27 // pred_check
          %p558 = pneg %p119
        $region42: #{tpu_custom_call.1} parent=27 // pred_check_branch
          %560 = sbr.rel (%p558) target = $region44
        $region43: #{tpu_custom_call.1} parent=27 // pred_region
          %562 = vsyncadd %s539, 0
          %s563 = scalar_lea.hbm %s2, %s37
          %s565 = sshll.u32 %s541, 4
          %s566 = int_to_ptr.vmem [resolvable:$true] %s565
          %s567 = sshll.u32 %s563, 4
          %s568 = int_to_ptr.hbm [resolvable:$true] %s567
          %570 = dma.vmem_to_hbm [thread:$0]  %s566, 16, %s568, %s539
        $region44: #{tpu_custom_call.1} parent=27 // pred_fallthru
          _
        // Predicated region
        $region45: #{tpu_custom_call.1} parent=27 // pred_check
          %p571 = pneg %p145
        $region46: #{tpu_custom_call.1} parent=27 // pred_check_branch
          %573 = sbr.rel (%p571) target = $region48
        $region47: #{tpu_custom_call.1} parent=27 // pred_region
          %575 = vsyncadd %s543, 0
          %s576 = scalar_lea.hbm %s3, %s37
          %s578 = sshll.u32 %s545, 4
          %s579 = int_to_ptr.vmem [resolvable:$true] %s578
          %s580 = sshll.u32 %s576, 4
          %s581 = int_to_ptr.hbm [resolvable:$true] %s580
          %583 = dma.vmem_to_hbm [thread:$0]  %s579, 16, %s581, %s543
        $region48: #{tpu_custom_call.1} parent=27 // pred_fallthru
          _
        // Predicated region
        $region49: #{tpu_custom_call.1} parent=27 // pred_check
          %p584 = pneg %p171
        $region50: #{tpu_custom_call.1} parent=27 // pred_check_branch
          %586 = sbr.rel (%p584) target = $region52
        $region51: #{tpu_custom_call.1} parent=27 // pred_region
          %588 = vsyncadd %s547, 0
          %s589 = scalar_lea.hbm %s4, %s37
          %s591 = sshll.u32 %s549, 4
          %s592 = int_to_ptr.vmem [resolvable:$true] %s591
          %s593 = sshll.u32 %s589, 4
          %s594 = int_to_ptr.hbm [resolvable:$true] %s593
          %596 = dma.vmem_to_hbm [thread:$0]  %s592, 16, %s594, %s547
        $region52: #{tpu_custom_call.1} parent=27 // pred_fallthru
          _
        // Predicated region
        $region53: #{tpu_custom_call.1} parent=27 // pred_check
          %p597 = pneg %p197
        $region54: #{tpu_custom_call.1} parent=27 // pred_check_branch
          %599 = sbr.rel (%p597) target = $region56
        $region55: #{tpu_custom_call.1} parent=27 // pred_region
          %601 = vsyncadd %s551, 0
          %s602 = scalar_lea.hbm %s5, %s37
          %s604 = sshll.u32 %s553, 4
          %s605 = int_to_ptr.vmem [resolvable:$true] %s604
          %s606 = sshll.u32 %s602, 4
          %s607 = int_to_ptr.hbm [resolvable:$true] %s606
          %609 = dma.vmem_to_hbm [thread:$0]  %s605, 16, %s607, %s551
        $region56: #{tpu_custom_call.1} parent=27 // pred_fallthru
          _
        // Predicated region
        $region57: #{tpu_custom_call.1} parent=27 // pred_check
          %p610 = pneg %p223
        $region58: #{tpu_custom_call.1} parent=27 // pred_check_branch
          %612 = sbr.rel (%p610) target = $region60
        $region59: #{tpu_custom_call.1} parent=27 // pred_region
          %614 = vsyncadd %s555, 0
          %s615 = scalar_lea.hbm %s6, %s37
          %s617 = sshll.u32 %s557, 4
          %s618 = int_to_ptr.vmem [resolvable:$true] %s617
          %s619 = sshll.u32 %s615, 4
          %s620 = int_to_ptr.hbm [resolvable:$true] %s619
          %622 = dma.vmem_to_hbm [thread:$0]  %s618, 16, %s620, %s555
        $region60: #{tpu_custom_call.1} parent=27 // pred_fallthru
          _
      $region28: #{tpu_custom_call.1} parent=5 // pred_fallthru
        _
      %p623 = scmp.le.s32.totalorder 2, %s28
      // Predicated region
      $region61: #{tpu_custom_call.1} parent=5 // pred_check
        %p624 = pneg %p623
      $region62: #{tpu_custom_call.1} parent=5 // pred_check_branch
        %626 = sbr.rel (%p624) target = $region64
      $region63: #{tpu_custom_call.1} parent=5 // pred_region
        %s627 = ssub.s32 %s28, 2
        // Predicated region
        $region65: #{tpu_custom_call.1} parent=63 // pred_check
          %p628 = pneg %p125
        $region66: #{tpu_custom_call.1} parent=63 // pred_check_branch
          %630 = sbr.rel (%p628) target = $region68
        $region67: #{tpu_custom_call.1} parent=63 // pred_region
          %s631 = sand.u32 %s110, 1
          %s632 = scalar_lea.sflag [#allocation4], %s631
          %s633 = sand.u32 %s110, 1
          %s634 = scalar_lea.vmem [#allocation7], %s633
          %636 = dma.done %s632, 16
        $region68: #{tpu_custom_call.1} parent=63 // pred_fallthru
          _
        // Predicated region
        $region69: #{tpu_custom_call.1} parent=63 // pred_check
          %p637 = pneg %p151
        $region70: #{tpu_custom_call.1} parent=63 // pred_check_branch
          %639 = sbr.rel (%p637) target = $region72
        $region71: #{tpu_custom_call.1} parent=63 // pred_region
          %s640 = sand.u32 %s34, 1
          %s641 = scalar_lea.sflag [#allocation9], %s640
          %s642 = sand.u32 %s136, 1
          %s643 = scalar_lea.vmem [#allocation8], %s642
          %645 = dma.done %s641, 16
        $region72: #{tpu_custom_call.1} parent=63 // pred_fallthru
          _
        // Predicated region
        $region73: #{tpu_custom_call.1} parent=63 // pred_check
          %p646 = pneg %p177
        $region74: #{tpu_custom_call.1} parent=63 // pred_check_branch
          %648 = sbr.rel (%p646) target = $region76
        $region75: #{tpu_custom_call.1} parent=63 // pred_region
          %s649 = sand.u32 %s34, 1
          %s650 = scalar_lea.sflag [#allocation9], %s649
          %s651 = sand.u32 %s162, 1
          %s652 = scalar_lea.vmem [#allocation10], %s651
          %654 = dma.done %s650, 16
        $region76: #{tpu_custom_call.1} parent=63 // pred_fallthru
          _
        // Predicated region
        $region77: #{tpu_custom_call.1} parent=63 // pred_check
          %p655 = pneg %p203
        $region78: #{tpu_custom_call.1} parent=63 // pred_check_branch
          %657 = sbr.rel (%p655) target = $region80
        $region79: #{tpu_custom_call.1} parent=63 // pred_region
          %s658 = sand.u32 %s34, 1
          %s659 = scalar_lea.sflag [#allocation12], %s658
          %s660 = sand.u32 %s188, 1
          %s661 = scalar_lea.vmem [#allocation11], %s660
          %663 = dma.done %s659, 16
        $region80: #{tpu_custom_call.1} parent=63 // pred_fallthru
          _
        // Predicated region
        $region81: #{tpu_custom_call.1} parent=63 // pred_check
          %p664 = pneg %p229
        $region82: #{tpu_custom_call.1} parent=63 // pred_check_branch
          %666 = sbr.rel (%p664) target = $region84
        $region83: #{tpu_custom_call.1} parent=63 // pred_region
          %s667 = sand.u32 %s34, 1
          %s668 = scalar_lea.sflag [#allocation12], %s667
          %s669 = sand.u32 %s214, 1
          %s670 = scalar_lea.vmem [#allocation13], %s669
          %672 = dma.done %s668, 16
        $region84: #{tpu_custom_call.1} parent=63 // pred_fallthru
          _
      $region64: #{tpu_custom_call.1} parent=5 // pred_fallthru
        _
    $region6: #{tpu_custom_call.1} parent=1 // loop_footer
      %s32 = sadd.s32 1, %s28
    $region7: #{tpu_custom_call.1} parent=1 // loop_footer_branch
      %27 = sbr.rel target = $region3
    $region8: #{tpu_custom_call.1} parent=1 // loop_exit
      _
    %673 = vsyncpa [#allocation3], 1
    %s674 = scalar_lea.sflag [#allocation3], 1
    %675 = vsyncpa %s674, 1
    %676 = vsyncpa [#allocation6], 1
    %s677 = scalar_lea.sflag [#allocation6], 1
    %678 = vsyncpa %s677, 1
    %679 = vsyncpa [#allocation4], 1
    %s680 = scalar_lea.sflag [#allocation4], 1
    %681 = vsyncpa %s680, 1
    %682 = vsyncpa [#allocation9], 1
    %s683 = scalar_lea.sflag [#allocation9], 1
    %684 = vsyncpa %s683, 1
    %685 = vsyncpa [#allocation12], 1
    %s686 = scalar_lea.sflag [#allocation12], 1
    %687 = vsyncpa %s686, 1

</llo_original>
